<compile_context>
chip_gen: v5e
topology: v5e:2x2
jax: 0.10.0
libtpu: 0.0.40
codegen_flags: <defaults>
</compile_context>

<pallas_src>
import functools

import jax
import jax.numpy as jnp
from jax import lax
from jax.experimental import pallas as pl
from jax.experimental.pallas import tpu as pltpu

_LANES = 128


def _round_up(x, m):
    return ((x + m - 1) // m) * m


# ----------------------------------------------------------------------------
# Kernels
# ----------------------------------------------------------------------------
def _pixelnorm_packed_kernel(x_ref, m_ref, o_ref, *, eps):
    """Lane-packed pixel-norm.

    x_ref: (T, 128) tile; each 128-lane row holds G = 128 // C points.
    m_ref: (128, 128) block-diagonal ones matrix (lane-group membership).
    Lane j of (x*x) @ M is the sum of squares over the C channels of the point
    owning lane j, i.e. the per-point norm already broadcast back across that
    point's channel lanes.
    """
    x = x_ref[...].astype(jnp.float32)                       # (T, 128)
    sq = x * x
    ss = lax.dot_general(
        sq, m_ref[...],
        dimension_numbers=(((1,), (0,)), ((), ())),
        precision=lax.Precision.HIGHEST,
        preferred_element_type=jnp.float32,
    )                                                        # (T, 128)
    o_ref[...] = (x * lax.rsqrt(ss + jnp.float32(eps))).astype(o_ref.dtype)


def _pixelnorm_rowwise_kernel(x_ref, o_ref, *, eps):
    """Unpacked fallback: (T, C) tile, cross-lane reduce per row."""
    x = x_ref[...].astype(jnp.float32)                       # (T, C)
    ss = jnp.sum(x * x, axis=1, keepdims=True)               # (T, 1)
    o_ref[...] = (x * lax.rsqrt(ss + jnp.float32(eps))).astype(o_ref.dtype)


# ----------------------------------------------------------------------------
# Wrapper
# ----------------------------------------------------------------------------
def minkowski_pixel_norm(features, *, eps=1e-8, block_rows=1024):
    """Pixel-normalize sparse-tensor features of shape (N, C)."""
    N, C = features.shape
    out_dtype = features.dtype

    # --- Lane-packed fast path: C divides 128 -------------------------------
    if C < _LANES and _LANES % C == 0:
        g = _LANES // C                      # points packed per 128-lane row
        p = pl.cdiv(N, g)                    # packed rows needed
        tile_p = _round_up(min(block_rows, p), 8)
        p_pad = _round_up(p, tile_p)
        n_pad = p_pad * g

        f = features
        if n_pad != N:
            f = jnp.pad(f, ((0, n_pad - N), (0, 0)))         # zero rows -> zero out
        f_packed = f.reshape(p_pad, _LANES)

        group_ids = jnp.arange(_LANES, dtype=jnp.int32) // C
        m = (group_ids[:, None] == group_ids[None, :]).astype(jnp.float32)

        out_packed = pl.pallas_call(
            functools.partial(_pixelnorm_packed_kernel, eps=eps),
            out_shape=jax.ShapeDtypeStruct((p_pad, _LANES), out_dtype),
            grid=(p_pad // tile_p,),
            in_specs=[
                pl.BlockSpec((tile_p, _LANES), lambda i: (i, 0)),
                pl.BlockSpec((_LANES, _LANES), lambda i: (0, 0)),  # stays resident
            ],
            out_specs=pl.BlockSpec((tile_p, _LANES), lambda i: (i, 0)),
            compiler_params=pltpu.CompilerParams(
                dimension_semantics=("parallel",),
            ),
        )(f_packed, m)

        return out_packed.reshape(n_pad, C)[:N]

    # --- General fallback path ----------------------------------------------
    # Cap each block to ~2 MiB so double-buffered in+out stays well under the
    # scoped VMEM default on every generation (v5e 16 MiB ... v7x 32 MiB).
    max_rows_by_vmem = max(8, (((2 * 1024 * 1024) // (4 * C)) // 8) * 8)
    tile_n = _round_up(min(block_rows, max_rows_by_vmem, N), 8)
    n_pad = _round_up(N, tile_n)

    f = features
    if n_pad != N:
        f = jnp.pad(f, ((0, n_pad - N), (0, 0)))

    out = pl.pallas_call(
        functools.partial(_pixelnorm_rowwise_kernel, eps=eps),
        out_shape=jax.ShapeDtypeStruct((n_pad, C), out_dtype),
        grid=(n_pad // tile_n,),
        in_specs=[pl.BlockSpec((tile_n, C), lambda i: (i, 0))],
        out_specs=pl.BlockSpec((tile_n, C), lambda i: (i, 0)),
        compiler_params=pltpu.CompilerParams(
            dimension_semantics=("parallel",),
        ),
    )(f)
    return out[:N]


# ----------------------------------------------------------------------------
# Reference & test
# ----------------------------------------------------------------------------
def _reference_pixel_norm(f, eps=1e-8):
    f32 = f.astype(jnp.float32)
    norm = jnp.sum(f32 * f32, axis=1, keepdims=True)
    return (f32 / jnp.sqrt(norm + eps)).astype(f.dtype)


if __name__ == "__main__":
    key = jax.random.PRNGKey(0)
    k1, k2 = jax.random.split(key)

    # Packed path: C = 8 divides 128; N = 1000 exercises row padding and,
    # with block_rows=64, a multi-step parallel grid (2 tiles of 64 packed rows).
    N1, C1 = 1000, 8
    f1 = jax.random.normal(k1, (N1, C1), dtype=jnp.float32)
    out1 = jax.block_until_ready(minkowski_pixel_norm(f1, eps=1e-8, block_rows=64))
    ref1 = _reference_pixel_norm(f1, eps=1e-8)
    assert out1.shape == (N1, C1)
    assert jnp.allclose(out1, ref1, atol=1e-4, rtol=1e-4), "packed path mismatch"

    # Fallback path: C = 24 does not divide 128, ragged N.
    N2, C2 = 57, 24
    f2 = jax.random.normal(k2, (N2, C2), dtype=jnp.float32)
    out2 = jax.block_until_ready(minkowski_pixel_norm(f2, eps=1e-8))
    ref2 = _reference_pixel_norm(f2, eps=1e-8)
    assert out2.shape == (N2, C2)
    assert jnp.allclose(out2, ref2, atol=1e-4, rtol=1e-4), "fallback path mismatch"

    # TODO(synk): ME.SparseTensor coordinate_manager / coordinate_map_key
    # re-wrapping is metadata-only plumbing with no numerical content.
    print("KERNEL_OK")
</pallas_src>

<mosaic_0001>
module attributes {stable_mosaic.version = 11 : i64} {
  func.func @_pixelnorm_packed_kernel(%arg0: i32, %arg1: memref<64x128xf32, #tpu.memory_space<vmem>>, %arg2: memref<128x128xf32, #tpu.memory_space<vmem>>, %arg3: memref<64x128xf32, #tpu.memory_space<vmem>>) attributes {dimension_semantics = [#tpu.dimension_semantics<parallel>], iteration_bounds = array<i64: 1>, scalar_prefetch = 0 : i64, scratch_operands = 0 : i64, tpu.core_type = #tpu.core_type<tc>, window_params = [{transform_indices = @transform_0, window_bounds = array<i64: 64, 128>}, {pipeline_mode = #tpu.pipeline_mode<synchronous>, transform_indices = @transform_1, window_bounds = array<i64: 128, 128>}, {transform_indices = @transform_2, window_bounds = array<i64: 64, 128>}]} {
    %c0 = arith.constant 0 : index
    %c0_0 = arith.constant 0 : index
    %0 = vector.load %arg1[%c0, %c0_0] : memref<64x128xf32, #tpu.memory_space<vmem>>, vector<64x128xf32>
    %1 = arith.mulf %0, %0 : vector<64x128xf32>
    %c0_1 = arith.constant 0 : index
    %c0_2 = arith.constant 0 : index
    %2 = vector.load %arg2[%c0_1, %c0_2] : memref<128x128xf32, #tpu.memory_space<vmem>>, vector<128x128xf32>
    %cst = arith.constant dense<0.000000e+00> : vector<64x128xf32>
    %3 = tpu.matmul %1, %2, %cst {dimension_numbers = #tpu.dot_dimension_numbers<[1], [0], [0], [1], [0, 0, 1, 1], [], []>, precision = #tpu.contract_precision<fp32>} : vector<64x128xf32>, vector<128x128xf32>, vector<64x128xf32> -> vector<64x128xf32>
    %cst_3 = arith.constant 9.99999993E-9 : f32
    %4 = vector.broadcast %cst_3 : f32 to vector<64x128xf32>
    %5 = arith.addf %3, %4 : vector<64x128xf32>
    %6 = math.rsqrt %5 : vector<64x128xf32>
    %7 = arith.mulf %0, %6 : vector<64x128xf32>
    %c0_4 = arith.constant 0 : index
    %c0_5 = arith.constant 0 : index
    %8 = vector.load %arg3[%c0_4, %c0_5] : memref<64x128xf32, #tpu.memory_space<vmem>>, vector<64x128xf32>
    tpu.vector_store %arg3[%c0_4, %c0_5], %7 {strides = array<i32>} : memref<64x128xf32, #tpu.memory_space<vmem>>, vector<64x128xf32>,
    return
  }
  func.func @transform_0(%arg0: i32) -> (i32, i32) {
    %c0_i32 = arith.constant 0 : i32
    %c0_i32_0 = arith.constant 0 : i32
    return %arg0, %c0_i32 : i32, i32
  }
  func.func @transform_1(%arg0: i32) -> (i32, i32) {
    %c0_i32 = arith.constant 0 : i32
    %c0_i32_0 = arith.constant 0 : i32
    %c0_i32_1 = arith.constant 0 : i32
    return %c0_i32, %c0_i32_0 : i32, i32
  }
  func.func @transform_2(%arg0: i32) -> (i32, i32) {
    %c0_i32 = arith.constant 0 : i32
    %c0_i32_0 = arith.constant 0 : i32
    return %arg0, %c0_i32 : i32, i32
  }
}

</mosaic_0001>

<llo_original>
// kernel: tpu_custom_call.1
$region0: #{tpu_custom_call.1}
  #allocation0 [shape = 'u32[]', space=smem, size = 0x4, offset = 0x4, fixed_abs, tag = 'smem constant byte address 0x4 - core index']
  #allocation1 [shape = 'u32[72,128]{1,0:T(1,128)}', space=vmem, size = 0x9000, scoped, tag = 'internal scratch']
  %s0 = inlined_call_operand.hbm [shape: f32[64,128], index: 0, kind: input, shape index: {}]
  %s1 = inlined_call_operand.hbm [shape: f32[128,128], index: 1, kind: input, shape index: {}]
  %s2 = inlined_call_operand.hbm [shape: f32[64,128], index: 2, kind: output, shape index: {}]
  %s3 = sld [smem:[#allocation0]]
  $region26: #{tpu_custom_call.1} parent=0
    _
  %s5 = ssub.s32 1, %s3
  %s6 = scalar_select 0, %s5, %s3
  $region1: #{tpu_custom_call.1} parent=0
    #allocation2 [shape = 'u8[32768]{0}', space=vmem, size = 0x8000, scoped, tag = 'input window, operand 0, single buffered']
    #allocation3 [shape = 's32[1]{0}', space=sflag, size = 0x4, scoped, tag = 'scoped memory for tpu_custom_call.1']
    #allocation4 [shape = 's32[1]{0}', space=sflag, size = 0x4, scoped, tag = 'scoped memory for tpu_custom_call.1']
    #allocation5 [shape = 'u8[65536]{0}', space=vmem, size = 0x10000, scoped, tag = 'input window, operand 1, single buffered']
    #allocation6 [shape = 's32[1]{0}', space=sflag, size = 0x4, scoped, tag = 'scoped memory for tpu_custom_call.1']
    #allocation7 [shape = 'u8[32768]{0}', space=vmem, size = 0x8000, scoped, tag = 'output window, operand 0, single buffered']
    %7 = vsyncpa [#allocation3], 0
    %8 = vsyncpa [#allocation6], 0
    %9 = vsyncpa [#allocation4], 0
    // Predicated region
    $region2: #{tpu_custom_call.1} parent=1 // pred_check
      _
    $region3: #{tpu_custom_call.1} parent=1 // pred_check_branch
      %11 = sbr.rel (0) target = $region5
    $region4: #{tpu_custom_call.1} parent=1 // pred_region
      %13 = vsyncadd [#allocation3], 0
      %s14 = sshll.u32 %s0, 4
      %s15 = int_to_ptr.hbm [resolvable:$true] %s14
      %s16 = sshll.u32 [#allocation2], 4
      %s17 = int_to_ptr.vmem [resolvable:$true] %s16
      %22 = dma.hbm_to_vmem [thread:$0]  %s15, 1024, %s17, [#allocation3], 128, 128, 8
    $region5: #{tpu_custom_call.1} parent=1 // pred_fallthru
      _
    // Predicated region
    $region6: #{tpu_custom_call.1} parent=1 // pred_check
      _
    $region7: #{tpu_custom_call.1} parent=1 // pred_check_branch
      %24 = sbr.rel (0) target = $region9
    $region8: #{tpu_custom_call.1} parent=1 // pred_region
      %26 = vsyncadd [#allocation6], 0
      %s27 = sshll.u32 %s1, 4
      %s28 = int_to_ptr.hbm [resolvable:$true] %s27
      %s29 = sshll.u32 [#allocation5], 4
      %s30 = int_to_ptr.vmem [resolvable:$true] %s29
      %35 = dma.hbm_to_vmem [thread:$0]  %s28, 2048, %s30, [#allocation6], 128, 128, 8
    $region9: #{tpu_custom_call.1} parent=1 // pred_fallthru
      _
    // Predicated region
    $region10: #{tpu_custom_call.1} parent=1 // pred_check
      _
    $region11: #{tpu_custom_call.1} parent=1 // pred_check_branch
      %37 = sbr.rel (0) target = $region13
    $region12: #{tpu_custom_call.1} parent=1 // pred_region
      %39 = dma.done [#allocation3], 1024
    $region13: #{tpu_custom_call.1} parent=1 // pred_fallthru
      _
    // Predicated region
    $region14: #{tpu_custom_call.1} parent=1 // pred_check
      _
    $region15: #{tpu_custom_call.1} parent=1 // pred_check_branch
      %41 = sbr.rel (0) target = $region17
    $region16: #{tpu_custom_call.1} parent=1 // pred_region
      %43 = dma.done [#allocation6], 2048
    $region17: #{tpu_custom_call.1} parent=1 // pred_fallthru
      _
    %v44 = vld [vmem:[#allocation2] sm:$0xff]
    %v45 = vld [vmem:[#allocation2 + $0x8] sm:$0xff]
    %v46 = vld [vmem:[#allocation2 + $0x10] sm:$0xff]
    %v47 = vld [vmem:[#allocation2 + $0x18] sm:$0xff]
    %v48 = vld [vmem:[#allocation2 + $0x20] sm:$0xff]
    %v49 = vld [vmem:[#allocation2 + $0x28] sm:$0xff]
    %v50 = vld [vmem:[#allocation2 + $0x30] sm:$0xff]
    %v51 = vld [vmem:[#allocation2 + $0x38] sm:$0xff]
    %v52 = vmul.f32 %v44, %v44
    %v53 = vmul.f32 %v45, %v45
    %v54 = vmul.f32 %v46, %v46
    %v55 = vmul.f32 %v47, %v47
    %v56 = vmul.f32 %v48, %v48
    %v57 = vmul.f32 %v49, %v49
    %v58 = vmul.f32 %v50, %v50
    %v59 = vmul.f32 %v51, %v51
    %v60 = vld [vmem:[#allocation5] sm:$0xff]
    %v61 = vld [vmem:[#allocation5 + $0x8] sm:$0xff]
    %v62 = vld [vmem:[#allocation5 + $0x10] sm:$0xff]
    %v63 = vld [vmem:[#allocation5 + $0x18] sm:$0xff]
    %v64 = vld [vmem:[#allocation5 + $0x20] sm:$0xff]
    %v65 = vld [vmem:[#allocation5 + $0x28] sm:$0xff]
    %v66 = vld [vmem:[#allocation5 + $0x30] sm:$0xff]
    %v67 = vld [vmem:[#allocation5 + $0x38] sm:$0xff]
    %v68 = vld [vmem:[#allocation5 + $0x40] sm:$0xff]
    %v69 = vld [vmem:[#allocation5 + $0x48] sm:$0xff]
    %v70 = vld [vmem:[#allocation5 + $0x50] sm:$0xff]
    %v71 = vld [vmem:[#allocation5 + $0x58] sm:$0xff]
    %v72 = vld [vmem:[#allocation5 + $0x60] sm:$0xff]
    %v73 = vld [vmem:[#allocation5 + $0x68] sm:$0xff]
    %v74 = vld [vmem:[#allocation5 + $0x70] sm:$0xff]
    %v75 = vld [vmem:[#allocation5 + $0x78] sm:$0xff]
    %v76 = vand.u32 %v75, 4294901760
    %77 = vmatpush.msra.mxu0 %v76
    %v78 = vand.u32 %v74, 4294901760
    %79 = vmatpush.msra.mxu0 %v78
    %v80 = vand.u32 %v73, 4294901760
    %81 = vmatpush.msra.mxu0 %v80
    %v82 = vand.u32 %v72, 4294901760
    %83 = vmatpush.msra.mxu0 %v82
    %v84 = vand.u32 %v71, 4294901760
    %85 = vmatpush.msra.mxu0 %v84
    %v86 = vand.u32 %v70, 4294901760
    %87 = vmatpush.msra.mxu0 %v86
    %v88 = vand.u32 %v69, 4294901760
    %89 = vmatpush.msra.mxu0 %v88
    %v90 = vand.u32 %v68, 4294901760
    %91 = vmatpush.msra.mxu0 %v90
    %v92 = vand.u32 %v67, 4294901760
    %93 = vmatpush.msra.mxu0 %v92
    %v94 = vand.u32 %v66, 4294901760
    %95 = vmatpush.msra.mxu0 %v94
    %v96 = vand.u32 %v65, 4294901760
    %97 = vmatpush.msra.mxu0 %v96
    %v98 = vand.u32 %v64, 4294901760
    %99 = vmatpush.msra.mxu0 %v98
    %v100 = vand.u32 %v63, 4294901760
    %101 = vmatpush.msra.mxu0 %v100
    %v102 = vand.u32 %v62, 4294901760
    %103 = vmatpush.msra.mxu0 %v102
    %v104 = vand.u32 %v61, 4294901760
    %105 = vmatpush.msra.mxu0 %v104
    %v106 = vand.u32 %v60, 4294901760
    %107 = vmatpush.msra.mxu0 %v106
    %v108 = vand.u32 %v52, 4294901760
    %v109 = vsub.f32 %v52, %v108
    %v110 = vand.u32 %v109, 4294901760
    %v111 = vsub.f32 %v109, %v110
    %v112 = vand.u32 %v111, 4294901760
    %113 = vmatmul.f32.gmra.mxu0 %v112
    %v114 = vpop.f32.mrf.mxu0
    %v115 = vadd.f32 1e-08, %v114
    %v116 = vand.u32 %v53, 4294901760
    %v117 = vsub.f32 %v53, %v116
    %v118 = vand.u32 %v117, 4294901760
    %v119 = vsub.f32 %v117, %v118
    %v120 = vand.u32 %v119, 4294901760
    %121 = vmatmul.f32.gmra.mxu0 %v120
    %v122 = vpop.f32.mrf.mxu0
    %v123 = vadd.f32 1e-08, %v122
    %v124 = vand.u32 %v54, 4294901760
    %v125 = vsub.f32 %v54, %v124
    %v126 = vand.u32 %v125, 4294901760
    %v127 = vsub.f32 %v125, %v126
    %v128 = vand.u32 %v127, 4294901760
    %129 = vmatmul.f32.gmra.mxu0 %v128
    %v130 = vpop.f32.mrf.mxu0
    %v131 = vadd.f32 1e-08, %v130
    %v132 = vand.u32 %v55, 4294901760
    %v133 = vsub.f32 %v55, %v132
    %v134 = vand.u32 %v133, 4294901760
    %v135 = vsub.f32 %v133, %v134
    %v136 = vand.u32 %v135, 4294901760
    %137 = vmatmul.f32.gmra.mxu0 %v136
    %v138 = vpop.f32.mrf.mxu0
    %v139 = vadd.f32 1e-08, %v138
    %v140 = vand.u32 %v56, 4294901760
    %v141 = vsub.f32 %v56, %v140
    %v142 = vand.u32 %v141, 4294901760
    %v143 = vsub.f32 %v141, %v142
    %v144 = vand.u32 %v143, 4294901760
    %145 = vmatmul.f32.gmra.mxu0 %v144
    %v146 = vpop.f32.mrf.mxu0
    %v147 = vadd.f32 1e-08, %v146
    %v148 = vand.u32 %v57, 4294901760
    %v149 = vsub.f32 %v57, %v148
    %v150 = vand.u32 %v149, 4294901760
    %v151 = vsub.f32 %v149, %v150
    %v152 = vand.u32 %v151, 4294901760
    %153 = vmatmul.f32.gmra.mxu0 %v152
    %v154 = vpop.f32.mrf.mxu0
    %v155 = vadd.f32 1e-08, %v154
    %v156 = vand.u32 %v58, 4294901760
    %v157 = vsub.f32 %v58, %v156
    %v158 = vand.u32 %v157, 4294901760
    %v159 = vsub.f32 %v157, %v158
    %v160 = vand.u32 %v159, 4294901760
    %161 = vmatmul.f32.gmra.mxu0 %v160
    %v162 = vpop.f32.mrf.mxu0
    %v163 = vadd.f32 1e-08, %v162
    %v164 = vand.u32 %v59, 4294901760
    %v165 = vsub.f32 %v59, %v164
    %v166 = vand.u32 %v165, 4294901760
    %v167 = vsub.f32 %v165, %v166
    %v168 = vand.u32 %v167, 4294901760
    %169 = vmatmul.f32.gmra.mxu0 %v168
    %v170 = vpop.f32.mrf.mxu0
    %v171 = vadd.f32 1e-08, %v170
    %172 = vdwg.mxu0
    %v173 = vand.u32 %v75, 4294901760
    %v174 = vsub.f32 %v75, %v173
    %v175 = vand.u32 %v174, 4294901760
    %v176 = vsub.f32 %v174, %v175
    %v177 = vand.u32 %v176, 4294901760
    %178 = vmatpush.msra.mxu0 %v177
    %v179 = vand.u32 %v74, 4294901760
    %v180 = vsub.f32 %v74, %v179
    %v181 = vand.u32 %v180, 4294901760
    %v182 = vsub.f32 %v180, %v181
    %v183 = vand.u32 %v182, 4294901760
    %184 = vmatpush.msra.mxu0 %v183
    %v185 = vand.u32 %v73, 4294901760
    %v186 = vsub.f32 %v73, %v185
    %v187 = vand.u32 %v186, 4294901760
    %v188 = vsub.f32 %v186, %v187
    %v189 = vand.u32 %v188, 4294901760
    %190 = vmatpush.msra.mxu0 %v189
    %v191 = vand.u32 %v72, 4294901760
    %v192 = vsub.f32 %v72, %v191
    %v193 = vand.u32 %v192, 4294901760
    %v194 = vsub.f32 %v192, %v193
    %v195 = vand.u32 %v194, 4294901760
    %196 = vmatpush.msra.mxu0 %v195
    %v197 = vand.u32 %v71, 4294901760
    %v198 = vsub.f32 %v71, %v197
    %v199 = vand.u32 %v198, 4294901760
    %v200 = vsub.f32 %v198, %v199
    %v201 = vand.u32 %v200, 4294901760
    %202 = vmatpush.msra.mxu0 %v201
    %v203 = vand.u32 %v70, 4294901760
    %v204 = vsub.f32 %v70, %v203
    %v205 = vand.u32 %v204, 4294901760
    %v206 = vsub.f32 %v204, %v205
    %v207 = vand.u32 %v206, 4294901760
    %208 = vmatpush.msra.mxu0 %v207
    %v209 = vand.u32 %v69, 4294901760
    %v210 = vsub.f32 %v69, %v209
    %v211 = vand.u32 %v210, 4294901760
    %v212 = vsub.f32 %v210, %v211
    %v213 = vand.u32 %v212, 4294901760
    %214 = vmatpush.msra.mxu0 %v213
    %v215 = vand.u32 %v68, 4294901760
    %v216 = vsub.f32 %v68, %v215
    %v217 = vand.u32 %v216, 4294901760
    %v218 = vsub.f32 %v216, %v217
    %v219 = vand.u32 %v218, 4294901760
    %220 = vmatpush.msra.mxu0 %v219
    %v221 = vand.u32 %v67, 4294901760
    %v222 = vsub.f32 %v67, %v221
    %v223 = vand.u32 %v222, 4294901760
    %v224 = vsub.f32 %v222, %v223
    %v225 = vand.u32 %v224, 4294901760
    %226 = vmatpush.msra.mxu0 %v225
    %v227 = vand.u32 %v66, 4294901760
    %v228 = vsub.f32 %v66, %v227
    %v229 = vand.u32 %v228, 4294901760
    %v230 = vsub.f32 %v228, %v229
    %v231 = vand.u32 %v230, 4294901760
    %232 = vmatpush.msra.mxu0 %v231
    %v233 = vand.u32 %v65, 4294901760
    %v234 = vsub.f32 %v65, %v233
    %v235 = vand.u32 %v234, 4294901760
    %v236 = vsub.f32 %v234, %v235
    %v237 = vand.u32 %v236, 4294901760
    %238 = vmatpush.msra.mxu0 %v237
    %v239 = vand.u32 %v64, 4294901760
    %v240 = vsub.f32 %v64, %v239
    %v241 = vand.u32 %v240, 4294901760
    %v242 = vsub.f32 %v240, %v241
    %v243 = vand.u32 %v242, 4294901760
    %244 = vmatpush.msra.mxu0 %v243
    %v245 = vand.u32 %v63, 4294901760
    %v246 = vsub.f32 %v63, %v245
    %v247 = vand.u32 %v246, 4294901760
    %v248 = vsub.f32 %v246, %v247
    %v249 = vand.u32 %v248, 4294901760
    %250 = vmatpush.msra.mxu0 %v249
    %v251 = vand.u32 %v62, 4294901760
    %v252 = vsub.f32 %v62, %v251
    %v253 = vand.u32 %v252, 4294901760
    %v254 = vsub.f32 %v252, %v253
    %v255 = vand.u32 %v254, 4294901760
    %256 = vmatpush.msra.mxu0 %v255
    %v257 = vand.u32 %v61, 4294901760
    %v258 = vsub.f32 %v61, %v257
    %v259 = vand.u32 %v258, 4294901760
    %v260 = vsub.f32 %v258, %v259
    %v261 = vand.u32 %v260, 4294901760
    %262 = vmatpush.msra.mxu0 %v261
    %v263 = vand.u32 %v60, 4294901760
    %v264 = vsub.f32 %v60, %v263
    %v265 = vand.u32 %v264, 4294901760
    %v266 = vsub.f32 %v264, %v265
    %v267 = vand.u32 %v266, 4294901760
    %268 = vmatpush.msra.mxu0 %v267
    %v269 = vand.u32 %v52, 4294901760
    %270 = vmatmul.f32.gmra.mxu0 %v269
    %v271 = vpop.f32.mrf.mxu0
    %v272 = vadd.f32 %v115, %v271
    %v273 = vand.u32 %v53, 4294901760
    %274 = vmatmul.f32.gmra.mxu0 %v273
    %v275 = vpop.f32.mrf.mxu0
    %v276 = vadd.f32 %v123, %v275
    %v277 = vand.u32 %v54, 4294901760
    %278 = vmatmul.f32.gmra.mxu0 %v277
    %v279 = vpop.f32.mrf.mxu0
    %v280 = vadd.f32 %v131, %v279
    %v281 = vand.u32 %v55, 4294901760
    %282 = vmatmul.f32.gmra.mxu0 %v281
    %v283 = vpop.f32.mrf.mxu0
    %v284 = vadd.f32 %v139, %v283
    %v285 = vand.u32 %v56, 4294901760
    %286 = vmatmul.f32.gmra.mxu0 %v285
    %v287 = vpop.f32.mrf.mxu0
    %v288 = vadd.f32 %v147, %v287
    %v289 = vand.u32 %v57, 4294901760
    %290 = vmatmul.f32.gmra.mxu0 %v289
    %v291 = vpop.f32.mrf.mxu0
    %v292 = vadd.f32 %v155, %v291
    %v293 = vand.u32 %v58, 4294901760
    %294 = vmatmul.f32.gmra.mxu0 %v293
    %v295 = vpop.f32.mrf.mxu0
    %v296 = vadd.f32 %v163, %v295
    %v297 = vand.u32 %v59, 4294901760
    %298 = vmatmul.f32.gmra.mxu0 %v297
    %v299 = vpop.f32.mrf.mxu0
    %v300 = vadd.f32 %v171, %v299
    %301 = vdwg.mxu0
    %v302 = vand.u32 %v75, 4294901760
    %v303 = vsub.f32 %v75, %v302
    %304 = vmatpush.msra.mxu0 %v303
    %v305 = vand.u32 %v74, 4294901760
    %v306 = vsub.f32 %v74, %v305
    %307 = vmatpush.msra.mxu0 %v306
    %v308 = vand.u32 %v73, 4294901760
    %v309 = vsub.f32 %v73, %v308
    %310 = vmatpush.msra.mxu0 %v309
    %v311 = vand.u32 %v72, 4294901760
    %v312 = vsub.f32 %v72, %v311
    %313 = vmatpush.msra.mxu0 %v312
    %v314 = vand.u32 %v71, 4294901760
    %v315 = vsub.f32 %v71, %v314
    %316 = vmatpush.msra.mxu0 %v315
    %v317 = vand.u32 %v70, 4294901760
    %v318 = vsub.f32 %v70, %v317
    %319 = vmatpush.msra.mxu0 %v318
    %v320 = vand.u32 %v69, 4294901760
    %v321 = vsub.f32 %v69, %v320
    %322 = vmatpush.msra.mxu0 %v321
    %v323 = vand.u32 %v68, 4294901760
    %v324 = vsub.f32 %v68, %v323
    %325 = vmatpush.msra.mxu0 %v324
    %v326 = vand.u32 %v67, 4294901760
    %v327 = vsub.f32 %v67, %v326
    %328 = vmatpush.msra.mxu0 %v327
    %v329 = vand.u32 %v66, 4294901760
    %v330 = vsub.f32 %v66, %v329
    %331 = vmatpush.msra.mxu0 %v330
    %v332 = vand.u32 %v65, 4294901760
    %v333 = vsub.f32 %v65, %v332
    %334 = vmatpush.msra.mxu0 %v333
    %v335 = vand.u32 %v64, 4294901760
    %v336 = vsub.f32 %v64, %v335
    %337 = vmatpush.msra.mxu0 %v336
    %v338 = vand.u32 %v63, 4294901760
    %v339 = vsub.f32 %v63, %v338
    %340 = vmatpush.msra.mxu0 %v339
    %v341 = vand.u32 %v62, 4294901760
    %v342 = vsub.f32 %v62, %v341
    %343 = vmatpush.msra.mxu0 %v342
    %v344 = vand.u32 %v61, 4294901760
    %v345 = vsub.f32 %v61, %v344
    %346 = vmatpush.msra.mxu0 %v345
    %v347 = vand.u32 %v60, 4294901760
    %v348 = vsub.f32 %v60, %v347
    %349 = vmatpush.msra.mxu0 %v348
    %v350 = vand.u32 %v52, 4294901760
    %v351 = vsub.f32 %v52, %v350
    %352 = vmatmul.f32.gmra.mxu0 %v351
    %v353 = vpop.f32.mrf.mxu0
    %v354 = vadd.f32 %v272, %v353
    %v355 = vand.u32 %v53, 4294901760
    %v356 = vsub.f32 %v53, %v355
    %357 = vmatmul.f32.gmra.mxu0 %v356
    %v358 = vpop.f32.mrf.mxu0
    %v359 = vadd.f32 %v276, %v358
    %v360 = vand.u32 %v54, 4294901760
    %v361 = vsub.f32 %v54, %v360
    %362 = vmatmul.f32.gmra.mxu0 %v361
    %v363 = vpop.f32.mrf.mxu0
    %v364 = vadd.f32 %v280, %v363
    %v365 = vand.u32 %v55, 4294901760
    %v366 = vsub.f32 %v55, %v365
    %367 = vmatmul.f32.gmra.mxu0 %v366
    %v368 = vpop.f32.mrf.mxu0
    %v369 = vadd.f32 %v284, %v368
    %v370 = vand.u32 %v56, 4294901760
    %v371 = vsub.f32 %v56, %v370
    %372 = vmatmul.f32.gmra.mxu0 %v371
    %v373 = vpop.f32.mrf.mxu0
    %v374 = vadd.f32 %v288, %v373
    %v375 = vand.u32 %v57, 4294901760
    %v376 = vsub.f32 %v57, %v375
    %377 = vmatmul.f32.gmra.mxu0 %v376
    %v378 = vpop.f32.mrf.mxu0
    %v379 = vadd.f32 %v292, %v378
    %v380 = vand.u32 %v58, 4294901760
    %v381 = vsub.f32 %v58, %v380
    %382 = vmatmul.f32.gmra.mxu0 %v381
    %v383 = vpop.f32.mrf.mxu0
    %v384 = vadd.f32 %v296, %v383
    %v385 = vand.u32 %v59, 4294901760
    %v386 = vsub.f32 %v59, %v385
    %387 = vmatmul.f32.gmra.mxu0 %v386
    %v388 = vpop.f32.mrf.mxu0
    %v389 = vadd.f32 %v300, %v388
    %390 = vdwg.mxu0
    %v391 = vand.u32 %v75, 4294901760
    %392 = vmatpush.msra.mxu0 %v391
    %v393 = vand.u32 %v74, 4294901760
    %394 = vmatpush.msra.mxu0 %v393
    %v395 = vand.u32 %v73, 4294901760
    %396 = vmatpush.msra.mxu0 %v395
    %v397 = vand.u32 %v72, 4294901760
    %398 = vmatpush.msra.mxu0 %v397
    %v399 = vand.u32 %v71, 4294901760
    %400 = vmatpush.msra.mxu0 %v399
    %v401 = vand.u32 %v70, 4294901760
    %402 = vmatpush.msra.mxu0 %v401
    %v403 = vand.u32 %v69, 4294901760
    %404 = vmatpush.msra.mxu0 %v403
    %v405 = vand.u32 %v68, 4294901760
    %406 = vmatpush.msra.mxu0 %v405
    %v407 = vand.u32 %v67, 4294901760
    %408 = vmatpush.msra.mxu0 %v407
    %v409 = vand.u32 %v66, 4294901760
    %410 = vmatpush.msra.mxu0 %v409
    %v411 = vand.u32 %v65, 4294901760
    %412 = vmatpush.msra.mxu0 %v411
    %v413 = vand.u32 %v64, 4294901760
    %414 = vmatpush.msra.mxu0 %v413
    %v415 = vand.u32 %v63, 4294901760
    %416 = vmatpush.msra.mxu0 %v415
    %v417 = vand.u32 %v62, 4294901760
    %418 = vmatpush.msra.mxu0 %v417
    %v419 = vand.u32 %v61, 4294901760
    %420 = vmatpush.msra.mxu0 %v419
    %v421 = vand.u32 %v60, 4294901760
    %422 = vmatpush.msra.mxu0 %v421
    %v423 = vand.u32 %v52, 4294901760
    %v424 = vsub.f32 %v52, %v423
    %v425 = vand.u32 %v424, 4294901760
    %426 = vmatmul.f32.gmra.mxu0 %v425
    %v427 = vpop.f32.mrf.mxu0
    %v428 = vadd.f32 %v354, %v427
    %v429 = vand.u32 %v53, 4294901760
    %v430 = vsub.f32 %v53, %v429
    %v431 = vand.u32 %v430, 4294901760
    %432 = vmatmul.f32.gmra.mxu0 %v431
    %v433 = vpop.f32.mrf.mxu0
    %v434 = vadd.f32 %v359, %v433
    %v435 = vand.u32 %v54, 4294901760
    %v436 = vsub.f32 %v54, %v435
    %v437 = vand.u32 %v436, 4294901760
    %438 = vmatmul.f32.gmra.mxu0 %v437
    %v439 = vpop.f32.mrf.mxu0
    %v440 = vadd.f32 %v364, %v439
    %v441 = vand.u32 %v55, 4294901760
    %v442 = vsub.f32 %v55, %v441
    %v443 = vand.u32 %v442, 4294901760
    %444 = vmatmul.f32.gmra.mxu0 %v443
    %v445 = vpop.f32.mrf.mxu0
    %v446 = vadd.f32 %v369, %v445
    %v447 = vand.u32 %v56, 4294901760
    %v448 = vsub.f32 %v56, %v447
    %v449 = vand.u32 %v448, 4294901760
    %450 = vmatmul.f32.gmra.mxu0 %v449
    %v451 = vpop.f32.mrf.mxu0
    %v452 = vadd.f32 %v374, %v451
    %v453 = vand.u32 %v57, 4294901760
    %v454 = vsub.f32 %v57, %v453
    %v455 = vand.u32 %v454, 4294901760
    %456 = vmatmul.f32.gmra.mxu0 %v455
    %v457 = vpop.f32.mrf.mxu0
    %v458 = vadd.f32 %v379, %v457
    %v459 = vand.u32 %v58, 4294901760
    %v460 = vsub.f32 %v58, %v459
    %v461 = vand.u32 %v460, 4294901760
    %462 = vmatmul.f32.gmra.mxu0 %v461
    %v463 = vpop.f32.mrf.mxu0
    %v464 = vadd.f32 %v384, %v463
    %v465 = vand.u32 %v59, 4294901760
    %v466 = vsub.f32 %v59, %v465
    %v467 = vand.u32 %v466, 4294901760
    %468 = vmatmul.f32.gmra.mxu0 %v467
    %v469 = vpop.f32.mrf.mxu0
    %v470 = vadd.f32 %v389, %v469
    %471 = vdwg.mxu0
    %v472 = vand.u32 %v75, 4294901760
    %v473 = vsub.f32 %v75, %v472
    %v474 = vand.u32 %v473, 4294901760
    %475 = vmatpush.msra.mxu0 %v474
    %v476 = vand.u32 %v74, 4294901760
    %v477 = vsub.f32 %v74, %v476
    %v478 = vand.u32 %v477, 4294901760
    %479 = vmatpush.msra.mxu0 %v478
    %v480 = vand.u32 %v73, 4294901760
    %v481 = vsub.f32 %v73, %v480
    %v482 = vand.u32 %v481, 4294901760
    %483 = vmatpush.msra.mxu0 %v482
    %v484 = vand.u32 %v72, 4294901760
    %v485 = vsub.f32 %v72, %v484
    %v486 = vand.u32 %v485, 4294901760
    %487 = vmatpush.msra.mxu0 %v486
    %v488 = vand.u32 %v71, 4294901760
    %v489 = vsub.f32 %v71, %v488
    %v490 = vand.u32 %v489, 4294901760
    %491 = vmatpush.msra.mxu0 %v490
    %v492 = vand.u32 %v70, 4294901760
    %v493 = vsub.f32 %v70, %v492
    %v494 = vand.u32 %v493, 4294901760
    %495 = vmatpush.msra.mxu0 %v494
    %v496 = vand.u32 %v69, 4294901760
    %v497 = vsub.f32 %v69, %v496
    %v498 = vand.u32 %v497, 4294901760
    %499 = vmatpush.msra.mxu0 %v498
    %v500 = vand.u32 %v68, 4294901760
    %v501 = vsub.f32 %v68, %v500
    %v502 = vand.u32 %v501, 4294901760
    %503 = vmatpush.msra.mxu0 %v502
    %v504 = vand.u32 %v67, 4294901760
    %v505 = vsub.f32 %v67, %v504
    %v506 = vand.u32 %v505, 4294901760
    %507 = vmatpush.msra.mxu0 %v506
    %v508 = vand.u32 %v66, 4294901760
    %v509 = vsub.f32 %v66, %v508
    %v510 = vand.u32 %v509, 4294901760
    %511 = vmatpush.msra.mxu0 %v510
    %v512 = vand.u32 %v65, 4294901760
    %v513 = vsub.f32 %v65, %v512
    %v514 = vand.u32 %v513, 4294901760
    %515 = vmatpush.msra.mxu0 %v514
    %v516 = vand.u32 %v64, 4294901760
    %v517 = vsub.f32 %v64, %v516
    %v518 = vand.u32 %v517, 4294901760
    %519 = vmatpush.msra.mxu0 %v518
    %v520 = vand.u32 %v63, 4294901760
    %v521 = vsub.f32 %v63, %v520
    %v522 = vand.u32 %v521, 4294901760
    %523 = vmatpush.msra.mxu0 %v522
    %v524 = vand.u32 %v62, 4294901760
    %v525 = vsub.f32 %v62, %v524
    %v526 = vand.u32 %v525, 4294901760
    %527 = vmatpush.msra.mxu0 %v526
    %v528 = vand.u32 %v61, 4294901760
    %v529 = vsub.f32 %v61, %v528
    %v530 = vand.u32 %v529, 4294901760
    %531 = vmatpush.msra.mxu0 %v530
    %v532 = vand.u32 %v60, 4294901760
    %v533 = vsub.f32 %v60, %v532
    %v534 = vand.u32 %v533, 4294901760
    %535 = vmatpush.msra.mxu0 %v534
    %v536 = vand.u32 %v52, 4294901760
    %537 = vmatmul.f32.gmra.mxu0 %v536
    %v538 = vpop.f32.mrf.mxu0
    %v539 = vadd.f32 %v428, %v538
    %v540 = vand.u32 %v53, 4294901760
    %541 = vmatmul.f32.gmra.mxu0 %v540
    %v542 = vpop.f32.mrf.mxu0
    %v543 = vadd.f32 %v434, %v542
    %v544 = vand.u32 %v54, 4294901760
    %545 = vmatmul.f32.gmra.mxu0 %v544
    %v546 = vpop.f32.mrf.mxu0
    %v547 = vadd.f32 %v440, %v546
    %v548 = vand.u32 %v55, 4294901760
    %549 = vmatmul.f32.gmra.mxu0 %v548
    %v550 = vpop.f32.mrf.mxu0
    %v551 = vadd.f32 %v446, %v550
    %v552 = vand.u32 %v56, 4294901760
    %553 = vmatmul.f32.gmra.mxu0 %v552
    %v554 = vpop.f32.mrf.mxu0
    %v555 = vadd.f32 %v452, %v554
    %v556 = vand.u32 %v57, 4294901760
    %557 = vmatmul.f32.gmra.mxu0 %v556
    %v558 = vpop.f32.mrf.mxu0
    %v559 = vadd.f32 %v458, %v558
    %v560 = vand.u32 %v58, 4294901760
    %561 = vmatmul.f32.gmra.mxu0 %v560
    %v562 = vpop.f32.mrf.mxu0
    %v563 = vadd.f32 %v464, %v562
    %v564 = vand.u32 %v59, 4294901760
    %565 = vmatmul.f32.gmra.mxu0 %v564
    %v566 = vpop.f32.mrf.mxu0
    %v567 = vadd.f32 %v470, %v566
    %568 = vdwg.mxu0
    %v569 = vand.u32 %v75, 4294901760
    %570 = vmatpush.msra.mxu0 %v569
    %v571 = vand.u32 %v74, 4294901760
    %572 = vmatpush.msra.mxu0 %v571
    %v573 = vand.u32 %v73, 4294901760
    %574 = vmatpush.msra.mxu0 %v573
    %v575 = vand.u32 %v72, 4294901760
    %576 = vmatpush.msra.mxu0 %v575
    %v577 = vand.u32 %v71, 4294901760
    %578 = vmatpush.msra.mxu0 %v577
    %v579 = vand.u32 %v70, 4294901760
    %580 = vmatpush.msra.mxu0 %v579
    %v581 = vand.u32 %v69, 4294901760
    %582 = vmatpush.msra.mxu0 %v581
    %v583 = vand.u32 %v68, 4294901760
    %584 = vmatpush.msra.mxu0 %v583
    %v585 = vand.u32 %v67, 4294901760
    %586 = vmatpush.msra.mxu0 %v585
    %v587 = vand.u32 %v66, 4294901760
    %588 = vmatpush.msra.mxu0 %v587
    %v589 = vand.u32 %v65, 4294901760
    %590 = vmatpush.msra.mxu0 %v589
    %v591 = vand.u32 %v64, 4294901760
    %592 = vmatpush.msra.mxu0 %v591
    %v593 = vand.u32 %v63, 4294901760
    %594 = vmatpush.msra.mxu0 %v593
    %v595 = vand.u32 %v62, 4294901760
    %596 = vmatpush.msra.mxu0 %v595
    %v597 = vand.u32 %v61, 4294901760
    %598 = vmatpush.msra.mxu0 %v597
    %v599 = vand.u32 %v60, 4294901760
    %600 = vmatpush.msra.mxu0 %v599
    %v601 = vand.u32 %v52, 4294901760
    %602 = vmatmul.f32.gmra.mxu0 %v601
    %v603 = vpop.f32.mrf.mxu0
    %v604 = vadd.f32 %v539, %v603
    %v605 = vand.u32 %v53, 4294901760
    %606 = vmatmul.f32.gmra.mxu0 %v605
    %v607 = vpop.f32.mrf.mxu0
    %v608 = vadd.f32 %v543, %v607
    %v609 = vand.u32 %v54, 4294901760
    %610 = vmatmul.f32.gmra.mxu0 %v609
    %v611 = vpop.f32.mrf.mxu0
    %v612 = vadd.f32 %v547, %v611
    %v613 = vand.u32 %v55, 4294901760
    %614 = vmatmul.f32.gmra.mxu0 %v613
    %v615 = vpop.f32.mrf.mxu0
    %v616 = vadd.f32 %v551, %v615
    %v617 = vand.u32 %v56, 4294901760
    %618 = vmatmul.f32.gmra.mxu0 %v617
    %v619 = vpop.f32.mrf.mxu0
    %v620 = vadd.f32 %v555, %v619
    %v621 = vand.u32 %v57, 4294901760
    %622 = vmatmul.f32.gmra.mxu0 %v621
    %v623 = vpop.f32.mrf.mxu0
    %v624 = vadd.f32 %v559, %v623
    %v625 = vand.u32 %v58, 4294901760
    %626 = vmatmul.f32.gmra.mxu0 %v625
    %v627 = vpop.f32.mrf.mxu0
    %v628 = vadd.f32 %v563, %v627
    %v629 = vand.u32 %v59, 4294901760
    %630 = vmatmul.f32.gmra.mxu0 %v629
    %v631 = vpop.f32.mrf.mxu0
    %v632 = vadd.f32 %v567, %v631
    %633 = vdwg.mxu0
    %v634 = vrsqrt.pop %v604
    %v635 = vmul.f32 %v634, %v604
    %v636 = vmul.f32 %v635, %v634
    %v637 = vmul.f32 0.5, %v636
    %v638 = vsub.f32 1.5, %v637
    %v639 = vmul.f32 %v634, %v638
    %vm640 = vweird.f32 %v604
    %vm641 = vweird.f32 %v634
    %vm642 = vmor %vm640, %vm641
    %v643 = vsel %vm642, %v634, %v639
    %v644 = vrsqrt.pop %v608
    %v645 = vmul.f32 %v644, %v608
    %v646 = vmul.f32 %v645, %v644
    %v647 = vmul.f32 0.5, %v646
    %v648 = vsub.f32 1.5, %v647
    %v649 = vmul.f32 %v644, %v648
    %vm650 = vweird.f32 %v608
    %vm651 = vweird.f32 %v644
    %vm652 = vmor %vm650, %vm651
    %v653 = vsel %vm652, %v644, %v649
    %v654 = vrsqrt.pop %v612
    %v655 = vmul.f32 %v654, %v612
    %v656 = vmul.f32 %v655, %v654
    %v657 = vmul.f32 0.5, %v656
    %v658 = vsub.f32 1.5, %v657
    %v659 = vmul.f32 %v654, %v658
    %vm660 = vweird.f32 %v612
    %vm661 = vweird.f32 %v654
    %vm662 = vmor %vm660, %vm661
    %v663 = vsel %vm662, %v654, %v659
    %v664 = vrsqrt.pop %v616
    %v665 = vmul.f32 %v664, %v616
    %v666 = vmul.f32 %v665, %v664
    %v667 = vmul.f32 0.5, %v666
    %v668 = vsub.f32 1.5, %v667
    %v669 = vmul.f32 %v664, %v668
    %vm670 = vweird.f32 %v616
    %vm671 = vweird.f32 %v664
    %vm672 = vmor %vm670, %vm671
    %v673 = vsel %vm672, %v664, %v669
    %v674 = vrsqrt.pop %v620
    %v675 = vmul.f32 %v674, %v620
    %v676 = vmul.f32 %v675, %v674
    %v677 = vmul.f32 0.5, %v676
    %v678 = vsub.f32 1.5, %v677
    %v679 = vmul.f32 %v674, %v678
    %vm680 = vweird.f32 %v620
    %vm681 = vweird.f32 %v674
    %vm682 = vmor %vm680, %vm681
    %v683 = vsel %vm682, %v674, %v679
    %v684 = vrsqrt.pop %v624
    %v685 = vmul.f32 %v684, %v624
    %v686 = vmul.f32 %v685, %v684
    %v687 = vmul.f32 0.5, %v686
    %v688 = vsub.f32 1.5, %v687
    %v689 = vmul.f32 %v684, %v688
    %vm690 = vweird.f32 %v624
    %vm691 = vweird.f32 %v684
    %vm692 = vmor %vm690, %vm691
    %v693 = vsel %vm692, %v684, %v689
    %v694 = vrsqrt.pop %v628
    %v695 = vmul.f32 %v694, %v628
    %v696 = vmul.f32 %v695, %v694
    %v697 = vmul.f32 0.5, %v696
    %v698 = vsub.f32 1.5, %v697
    %v699 = vmul.f32 %v694, %v698
    %vm700 = vweird.f32 %v628
    %vm701 = vweird.f32 %v694
    %vm702 = vmor %vm700, %vm701
    %v703 = vsel %vm702, %v694, %v699
    %v704 = vrsqrt.pop %v632
    %v705 = vmul.f32 %v704, %v632
    %v706 = vmul.f32 %v705, %v704
    %v707 = vmul.f32 0.5, %v706
    %v708 = vsub.f32 1.5, %v707
    %v709 = vmul.f32 %v704, %v708
    %vm710 = vweird.f32 %v632
    %vm711 = vweird.f32 %v704
    %vm712 = vmor %vm710, %vm711
    %v713 = vsel %vm712, %v704, %v709
    %v714 = vmul.f32 %v44, %v643
    %v715 = vmul.f32 %v45, %v653
    %v716 = vmul.f32 %v46, %v663
    %v717 = vmul.f32 %v47, %v673
    %v718 = vmul.f32 %v48, %v683
    %v719 = vmul.f32 %v49, %v693
    %v720 = vmul.f32 %v50, %v703
    %v721 = vmul.f32 %v51, %v713
    %722 = vst [vmem:[#allocation7] sm:$0xff] %v714
    %723 = vst [vmem:[#allocation7 + $0x8] sm:$0xff] %v715
    %724 = vst [vmem:[#allocation7 + $0x10] sm:$0xff] %v716
    %725 = vst [vmem:[#allocation7 + $0x18] sm:$0xff] %v717
    %726 = vst [vmem:[#allocation7 + $0x20] sm:$0xff] %v718
    %727 = vst [vmem:[#allocation7 + $0x28] sm:$0xff] %v719
    %728 = vst [vmem:[#allocation7 + $0x30] sm:$0xff] %v720
    %729 = vst [vmem:[#allocation7 + $0x38] sm:$0xff] %v721
    // Predicated region
    $region18: #{tpu_custom_call.1} parent=1 // pred_check
      _
    $region19: #{tpu_custom_call.1} parent=1 // pred_check_branch
      %731 = sbr.rel (0) target = $region21
    $region20: #{tpu_custom_call.1} parent=1 // pred_region
      %733 = vsyncadd [#allocation4], 0
      %s734 = sshll.u32 [#allocation7], 4
      %s735 = int_to_ptr.vmem [resolvable:$true] %s734
      %s736 = sshll.u32 %s2, 4
      %s737 = int_to_ptr.hbm [resolvable:$true] %s736
      %742 = dma.vmem_to_hbm [thread:$0]  %s735, 1024, %s737, [#allocation4], 128, 128, 8
    $region21: #{tpu_custom_call.1} parent=1 // pred_fallthru
      _
    // Predicated region
    $region22: #{tpu_custom_call.1} parent=1 // pred_check
      _
    $region23: #{tpu_custom_call.1} parent=1 // pred_check_branch
      %744 = sbr.rel (0) target = $region25
    $region24: #{tpu_custom_call.1} parent=1 // pred_region
      %746 = dma.done [#allocation4], 1024
    $region25: #{tpu_custom_call.1} parent=1 // pred_fallthru
      _
    %747 = vsyncpa [#allocation3], 1
    %748 = vsyncpa [#allocation6], 1
    %749 = vsyncpa [#allocation4], 1

</llo_original>
